<compile_context>
chip_gen: v7x
topology: tpu7x:2x2x1
jax: 0.10.0
libtpu: 0.0.40
codegen_flags: <defaults>
</compile_context>

<pallas_src>
import math

import jax
import jax.numpy as jnp
from jax.experimental import pallas as pl
from jax.experimental.pallas import tpu as pltpu


def _logdropout_kernel(x_ref, mask_ref, o_ref):
    """One (block_rows, W) tile: masked fill with -inf where mask != 0."""
    drop = mask_ref[...] != 0                     # (1, W) or (block_rows, W)
    x = x_ref[...]
    neg_inf = jnp.asarray(-jnp.inf, dtype=x.dtype)
    o_ref[...] = jnp.where(drop, neg_inf, x)      # broadcast over rows if needed


def _fold_lanes(m, n, target_lanes=512):
    """Fold factor k (power of two dividing m) so the lane axis is >= target."""
    k = 1
    while n * k < target_lanes and m % (k * 2) == 0:
        k *= 2
    return k


def _pick_block_rows(rows, width, itemsize,
                     target_bytes=2 * 1024 * 1024, sublane=32):
    """Largest divisor of `rows` that is a multiple of `sublane` and keeps one
    (block_rows, width) tile around ~target_bytes.  Falls back to the full
    extent (block shape == array shape is always a legal tiling)."""
    if rows <= sublane:
        return rows
    max_rows = max(sublane, target_bytes // max(1, width * itemsize))
    r = (min(max_rows, rows) // sublane) * sublane
    while r >= sublane:
        if rows % r == 0:
            return r
        r -= sublane
    return rows


def log_dropout(x, p, key, *, training=True, column_dropout=False,
                block_rows=None):
    """Pallas implementation of LogDropout.forward."""
    if (not training) or p <= 0:
        return x
    assert jnp.issubdtype(x.dtype, jnp.floating), (
        "LogDropout (-inf masked fill) requires a floating dtype")

    orig_shape = x.shape
    n = orig_shape[-1]
    m = int(math.prod(orig_shape[:-1]))
    x2 = x.reshape(m, n)

    # ---- lane folding: make the last (lane) axis dense ---------------------
    k = _fold_lanes(m, n)
    rows, width = m // k, n * k
    x2 = x2.reshape(rows, width)

    # ---- Bernoulli(p) annihilate mask (wrapper-side jax.random) ------------
    if column_dropout:
        # i.i.d. per element -> folding does not change the distribution.
        mask = jax.random.bernoulli(key, p, (rows, width)).astype(jnp.uint8)
    else:
        # one mask over the last dim of the original tensor, tiled k times so
        # folded column c maps to original column (c % n).
        col_mask = jax.random.bernoulli(key, p, (n,))
        mask = jnp.tile(col_mask, k).reshape(1, width).astype(jnp.int32)

    # ---- tiling -------------------------------------------------------------
    if block_rows is None:
        block_rows = _pick_block_rows(rows, width, x.dtype.itemsize)
    assert rows % block_rows == 0, "auto-tiler must pick a divisor of rows"
    grid = (rows // block_rows,)

    x_spec = pl.BlockSpec((block_rows, width), lambda i: (i, 0))
    if column_dropout:
        mask_spec = pl.BlockSpec((block_rows, width), lambda i: (i, 0))
    else:
        mask_spec = pl.BlockSpec((1, width), lambda i: (0, 0))
    out_spec = pl.BlockSpec((block_rows, width), lambda i: (i, 0))

    out2 = pl.pallas_call(
        _logdropout_kernel,
        out_shape=jax.ShapeDtypeStruct((rows, width), x.dtype),
        grid=grid,
        in_specs=[x_spec, mask_spec],
        out_specs=out_spec,
        compiler_params=pltpu.CompilerParams(
            dimension_semantics=("parallel",),
        ),
    )(x2, mask)

    return out2.reshape(orig_shape)


if __name__ == "__main__":
    key = jax.random.PRNGKey(0)
    kx, kd = jax.random.split(key)

    # small NCHW-like input consistent with a generic tensor input to LogDropout
    x = jax.random.normal(kx, (2, 4, 16, 16), dtype=jnp.float32)
    p = 0.4

    # 1) training, shared column mask over last dim
    y_col_shared = jax.block_until_ready(
        log_dropout(x, p, kd, training=True, column_dropout=False))

    # 2) training, elementwise mask
    y_elem = jax.block_until_ready(
        log_dropout(x, p, kd, training=True, column_dropout=True))

    # 3) eval mode -> identity
    y_eval = jax.block_until_ready(log_dropout(x, p, kd, training=False))

    # --- sanity checks -------------------------------------------------------
    # eval is identity
    assert jnp.array_equal(y_eval, x)

    # surviving entries are untouched; every non-surviving entry is exactly -inf
    for y in (y_col_shared, y_elem):
        fin = jnp.isfinite(y)
        assert jnp.array_equal(jnp.where(fin, y, 0.0), jnp.where(fin, x, 0.0))
        assert bool(jnp.all(jnp.where(fin, True, jnp.isneginf(y))))

    # shared-column mode: each last-dim index is either fully dropped or kept
    dropped = jnp.isneginf(y_col_shared.reshape(-1, x.shape[-1]))
    assert jnp.array_equal(jnp.any(dropped, axis=0), jnp.all(dropped, axis=0))

    # shared-column mode matches a pure-JAX reference built from the same key
    col_mask_ref = jax.random.bernoulli(kd, p, (x.shape[-1],))
    y_ref = jnp.where(col_mask_ref, -jnp.inf, x)
    assert jnp.array_equal(y_col_shared, y_ref)

    print("KERNEL_OK")
</pallas_src>

<mosaic_0001>
module attributes {stable_mosaic.version = 11 : i64} {
  func.func @_logdropout_kernel(%arg0: i32, %arg1: memref<4x512xf32, #tpu.memory_space<vmem>>, %arg2: memref<1x512xi32, #tpu.memory_space<vmem>>, %arg3: memref<4x512xf32, #tpu.memory_space<vmem>>) attributes {dimension_semantics = [#tpu.dimension_semantics<parallel>], iteration_bounds = array<i64: 1>, scalar_prefetch = 0 : i64, scratch_operands = 0 : i64, tpu.core_type = #tpu.core_type<tc>, window_params = [{transform_indices = @transform_0, window_bounds = array<i64: 4, 512>}, {pipeline_mode = #tpu.pipeline_mode<synchronous>, transform_indices = @transform_1, window_bounds = array<i64: 1, 512>}, {transform_indices = @transform_2, window_bounds = array<i64: 4, 512>}]} {
    %c0 = arith.constant 0 : index
    %c0_0 = arith.constant 0 : index
    %0 = vector.load %arg2[%c0, %c0_0] : memref<1x512xi32, #tpu.memory_space<vmem>>, vector<1x512xi32>
    %c0_i32 = arith.constant 0 : i32
    %1 = vector.broadcast %c0_i32 : i32 to vector<1x512xi32>
    %2 = arith.cmpi ne, %0, %1 : vector<1x512xi32>
    %c0_1 = arith.constant 0 : index
    %c0_2 = arith.constant 0 : index
    %3 = vector.load %arg1[%c0_1, %c0_2] : memref<4x512xf32, #tpu.memory_space<vmem>>, vector<4x512xf32>
    %cst = arith.constant 0xFF800000 : f32
    %4 = vector.shape_cast %2 : vector<1x512xi1> to vector<1x512xi1>
    %5 = vector.broadcast %4 : vector<1x512xi1> to vector<4x512xi1>
    %6 = vector.broadcast %cst : f32 to vector<4x512xf32>
    %7 = arith.select %5, %6, %3 : vector<4x512xi1>, vector<4x512xf32>
    %c0_3 = arith.constant 0 : index
    %c0_4 = arith.constant 0 : index
    %8 = vector.load %arg3[%c0_3, %c0_4] : memref<4x512xf32, #tpu.memory_space<vmem>>, vector<4x512xf32>
    tpu.vector_store %arg3[%c0_3, %c0_4], %7 {strides = array<i32>} : memref<4x512xf32, #tpu.memory_space<vmem>>, vector<4x512xf32>,
    return
  }
  func.func @transform_0(%arg0: i32) -> (i32, i32) {
    %c0_i32 = arith.constant 0 : i32
    %c0_i32_0 = arith.constant 0 : i32
    return %arg0, %c0_i32 : i32, i32
  }
  func.func @transform_1(%arg0: i32) -> (i32, i32) {
    %c0_i32 = arith.constant 0 : i32
    %c0_i32_0 = arith.constant 0 : i32
    %c0_i32_1 = arith.constant 0 : i32
    return %c0_i32, %c0_i32_0 : i32, i32
  }
  func.func @transform_2(%arg0: i32) -> (i32, i32) {
    %c0_i32 = arith.constant 0 : i32
    %c0_i32_0 = arith.constant 0 : i32
    return %arg0, %c0_i32 : i32, i32
  }
}

</mosaic_0001>

<llo_original>
// kernel: tpu_custom_call.1
$region0: #{tpu_custom_call.1}
  #allocation0 [shape = 'u32[]', space=smem, size = 0x4, offset = 0x4, fixed_abs, tag = 'smem constant byte address 0x4 - core index']
  #allocation1 [shape = 'u32[144,128]{1,0:T(1,128)}', space=vmem, size = 0x12000, scoped, tag = 'internal scratch']
  %s0 = inlined_call_operand.hbm [shape: f32[4,512], index: 0, kind: input, shape index: {}]
  %s1 = inlined_call_operand.hbm [shape: s32[1,512], index: 1, kind: input, shape index: {}]
  %s2 = inlined_call_operand.hbm [shape: f32[4,512], index: 2, kind: output, shape index: {}]
  %s3 = sld [smem:[#allocation0]]
  $region26: #{tpu_custom_call.1} parent=0
    _
  %s5 = ssub.s32 1, %s3
  %s6 = scalar_select 0, %s5, %s3
  $region1: #{tpu_custom_call.1} parent=0
    #allocation2 [shape = 'u8[8192]{0}', space=vmem, size = 0x2000, scoped, tag = 'input window, operand 0, single buffered']
    #allocation3 [shape = 's32[1]{0}', space=sflag, size = 0x4, scoped, tag = 'scoped memory for tpu_custom_call.1']
    #allocation4 [shape = 's32[1]{0}', space=sflag, size = 0x4, scoped, tag = 'scoped memory for tpu_custom_call.1']
    #allocation5 [shape = 'u8[2048]{0}', space=vmem, size = 0x800, scoped, tag = 'input window, operand 1, single buffered']
    #allocation6 [shape = 's32[1]{0}', space=sflag, size = 0x4, scoped, tag = 'scoped memory for tpu_custom_call.1']
    #allocation7 [shape = 'u8[8192]{0}', space=vmem, size = 0x2000, scoped, tag = 'output window, operand 0, single buffered']
    %7 = vsyncpa [#allocation3], 0
    %8 = vsyncpa [#allocation6], 0
    %9 = vsyncpa [#allocation4], 0
    // Predicated region
    $region2: #{tpu_custom_call.1} parent=1 // pred_check
      _
    $region3: #{tpu_custom_call.1} parent=1 // pred_check_branch
      %11 = sbr.rel (0) target = $region5
    $region4: #{tpu_custom_call.1} parent=1 // pred_region
      %s13 = ssub.s32 256, 256
      %14 = vsyncadd [#allocation3], %s13
      %s16 = sshll.u32 [#allocation2], 4
      %s17 = int_to_ptr.vmem [resolvable:$true] %s16
      %19 = dma.hbm_to_vmem [thread:$0]  %s0, 256, %s17, [#allocation3]
    $region5: #{tpu_custom_call.1} parent=1 // pred_fallthru
      _
    // Predicated region
    $region6: #{tpu_custom_call.1} parent=1 // pred_check
      _
    $region7: #{tpu_custom_call.1} parent=1 // pred_check_branch
      %21 = sbr.rel (0) target = $region9
    $region8: #{tpu_custom_call.1} parent=1 // pred_region
      %s23 = ssub.s32 64, 64
      %24 = vsyncadd [#allocation6], %s23
      %s26 = sshll.u32 [#allocation5], 4
      %s27 = int_to_ptr.vmem [resolvable:$true] %s26
      %29 = dma.hbm_to_vmem [thread:$0]  %s1, 64, %s27, [#allocation6]
    $region9: #{tpu_custom_call.1} parent=1 // pred_fallthru
      _
    // Predicated region
    $region10: #{tpu_custom_call.1} parent=1 // pred_check
      _
    $region11: #{tpu_custom_call.1} parent=1 // pred_check_branch
      %31 = sbr.rel (0) target = $region13
    $region12: #{tpu_custom_call.1} parent=1 // pred_region
      %32 = dma.done [#allocation3], 256
    $region13: #{tpu_custom_call.1} parent=1 // pred_fallthru
      _
    // Predicated region
    $region14: #{tpu_custom_call.1} parent=1 // pred_check
      _
    $region15: #{tpu_custom_call.1} parent=1 // pred_check_branch
      %34 = sbr.rel (0) target = $region17
    $region16: #{tpu_custom_call.1} parent=1 // pred_region
      %35 = dma.done [#allocation6], 64
    $region17: #{tpu_custom_call.1} parent=1 // pred_fallthru
      _
    %v36 = vld [vmem:[#allocation5] sm:$0xf]
    %vm37 = vcmp.ne.s32.totalorder %v36, 0
    %v38 = vld [vmem:[#allocation2] sm:$0xff]
    %v39 = vld [vmem:[#allocation2 + $0x8] sm:$0xff]
    %v40 = vsel %vm37, 1, 0
    %v41 = vlaneseq
    %v42 = vshrl.u32 %v41, 7
    %v43 = vsub.s32 0, %v42
    %v44 = vrot.slane %v40, %v43
    %v45 = vlaneseq
    %v46 = vshrl.u32 %v45, 7
    %v47 = vsub.s32 1, %v46
    %v48 = vrot.slane %v40, %v47
    %v49 = vlaneseq
    %v50 = vshrl.u32 %v49, 7
    %v51 = vsub.s32 2, %v50
    %v52 = vrot.slane %v40, %v51
    %v53 = vlaneseq
    %v54 = vshrl.u32 %v53, 7
    %v55 = vsub.s32 3, %v54
    %v56 = vrot.slane %v40, %v55
    %vm57 = vcmp.eq.s32.totalorder %v44, 1
    %vm58 = vcmp.eq.s32.totalorder %v48, 1
    %vm59 = vcmp.eq.s32.totalorder %v52, 1
    %vm60 = vcmp.eq.s32.totalorder %v56, 1
    %v63 = vcombine.high %v38, %v38
    %v64 = vcombine.high %v39, %v39
    %v67 = vsel %vm57, -inf, %v38
    %v68 = vsel %vm58, -inf, %v63
    %v69 = vsel %vm59, -inf, %v39
    %v70 = vsel %vm60, -inf, %v64
    %v75 = vcombine.low %v67, %v68
    %v76 = vcombine.low %v69, %v70
    %79 = vst [vmem:[#allocation7] sm:$0xff] %v75
    %80 = vst [vmem:[#allocation7 + $0x8] sm:$0xff] %v76
    // Predicated region
    $region18: #{tpu_custom_call.1} parent=1 // pred_check
      _
    $region19: #{tpu_custom_call.1} parent=1 // pred_check_branch
      %82 = sbr.rel (0) target = $region21
    $region20: #{tpu_custom_call.1} parent=1 // pred_region
      %s84 = ssub.s32 256, 256
      %85 = vsyncadd [#allocation4], %s84
      %s87 = sshll.u32 [#allocation7], 4
      %s88 = int_to_ptr.vmem [resolvable:$true] %s87
      %90 = dma.vmem_to_hbm [thread:$0]  %s88, 256, %s2, [#allocation4]
    $region21: #{tpu_custom_call.1} parent=1 // pred_fallthru
      _
    // Predicated region
    $region22: #{tpu_custom_call.1} parent=1 // pred_check
      _
    $region23: #{tpu_custom_call.1} parent=1 // pred_check_branch
      %92 = sbr.rel (0) target = $region25
    $region24: #{tpu_custom_call.1} parent=1 // pred_region
      %93 = dma.done [#allocation4], 256
    $region25: #{tpu_custom_call.1} parent=1 // pred_fallthru
      _
    %94 = vsyncpa [#allocation3], 1
    %95 = vsyncpa [#allocation6], 1
    %96 = vsyncpa [#allocation4], 1

</llo_original>
